<compile_context>
chip_gen: v6e
topology: v6e:2x2x1
jax: 0.10.0
libtpu: 0.0.40
codegen_flags: <defaults>
</compile_context>

<pallas_src>
import functools

import jax
import jax.numpy as jnp
import numpy as np
from jax.experimental import pallas as pl
from jax.experimental.pallas import tpu as pltpu

_INV_SQRT2 = 0.7071067811865476          # 1/sqrt(2)
_SQRT_2_OVER_PI = 0.7978845608028654     # sqrt(2/pi)


def _gelu(h, approx):
    if approx:
        # tanh-approximate GELU: tanh goes to the EUP (idle slot here).
        return 0.5 * h * (1.0 + jnp.tanh(
            _SQRT_2_OVER_PI * (h + 0.044715 * (h * h * h))))
    # Exact erf GELU (parity with torch nn.GELU default).
    return 0.5 * h * (1.0 + jax.lax.erf(h * _INV_SQRT2))


def _ffn_kernel_c2(x_ref, w1d_ref, b1_ref, w2_ref, b2_ref, o_ref,
                   *, eps, mxu_dtype, gelu_approx):
    """in_dim == 2 fast path.  x_ref: (TM, 2)."""
    x = x_ref[...].astype(jnp.float32)

    # 2-wide LayerNorm: mean = (x0+x1)/2, x0-mean = d, x1-mean = -d, var = d^2.
    d = 0.5 * (x[:, 0:1] - x[:, 1:2])                     # (TM, 1)
    xhat0 = d * jax.lax.rsqrt(d * d + eps)                # (TM, 1)
    # Ragged-last-block garbage rows stay finite here (masked on store anyway).

    # Linear 1 collapses to a single broadcast FMA (affine already folded).
    h = xhat0 * w1d_ref[...].astype(jnp.float32) + b1_ref[...].astype(jnp.float32)

    h = _gelu(h, gelu_approx)

    # Linear 2 on the MXU: (TM, hidden) @ (hidden, out_dim), f32 accumulation.
    y = jnp.dot(h.astype(mxu_dtype), w2_ref[...].astype(mxu_dtype),
                preferred_element_type=jnp.float32)
    y = y + b2_ref[...].astype(jnp.float32)
    o_ref[...] = y.astype(o_ref.dtype)


def _ffn_kernel_general(x_ref, w1_ref, b1_ref, w2_ref, b2_ref, o_ref,
                        *, eps, inv_d, mxu_dtype, gelu_approx):
    """General path (e.g. d_model=256 feed_forward / head).  x_ref: (TM, D)."""
    x = x_ref[...].astype(jnp.float32)

    mean = jnp.sum(x, axis=-1, keepdims=True) * inv_d     # XLU reduction
    xc = x - mean
    var = jnp.sum(xc * xc, axis=-1, keepdims=True) * inv_d
    xhat = xc * jax.lax.rsqrt(var + eps)

    h = jnp.dot(xhat.astype(mxu_dtype), w1_ref[...].astype(mxu_dtype),
                preferred_element_type=jnp.float32)
    h = h + b1_ref[...].astype(jnp.float32)

    h = _gelu(h, gelu_approx)

    y = jnp.dot(h.astype(mxu_dtype), w2_ref[...].astype(mxu_dtype),
                preferred_element_type=jnp.float32)
    y = y + b2_ref[...].astype(jnp.float32)
    o_ref[...] = y.astype(o_ref.dtype)


def _round_up(x, m):
    return (x + m - 1) // m * m


def fused_layernorm_mlp(x, params, *, tile_rows=512, eps=1e-5,
                        matmul_dtype=None, gelu_approximate=False,
                        out_dtype=None, min_grid_blocks=2):
    """Fused LayerNorm -> Linear -> GELU -> Linear.

    x: (..., in_dim) -> (..., out_dim).  Rows are flattened and tiled.
    matmul_dtype: None (f32 MXU) or jnp.bfloat16 (valid on v5e/v6e/v7x).
    gelu_approximate: False = erf (torch parity), True = tanh (EUP, faster).
    out_dtype: output dtype (defaults to x.dtype); bf16 halves writeback.
    min_grid_blocks: keep >= this many grid steps (v7x has 2 TensorCores).
    """
    gamma, beta, w1, b1, w2, b2 = params
    in_dim = x.shape[-1]
    hidden = w1.shape[1]
    out_dim = w2.shape[1]

    lead = x.shape[:-1]
    xf = x.reshape(-1, in_dim)
    n = xf.shape[0]

    # Row-tile alignment: 8 sublanes for 32-bit x, 16 for bf16, 32 for 8-bit.
    itemsize = jnp.dtype(x.dtype).itemsize
    row_align = max(8, 32 // max(itemsize, 1))

    tm_req = _round_up(max(tile_rows, row_align), row_align)
    # Cap tm so the grid keeps >= min_grid_blocks steps (both v7x TCs busy).
    tm_cap = _round_up(pl.cdiv(n, max(min_grid_blocks, 1)), row_align)
    tm = max(row_align, min(tm_req, tm_cap, _round_up(n, row_align)))
    grid = (pl.cdiv(n, tm),)          # ragged last block handled by Pallas

    mxu_dtype = jnp.float32 if matmul_dtype is None else matmul_dtype
    out_dtype = x.dtype if out_dtype is None else out_dtype

    # Fold the LayerNorm affine into the first linear (trace-time algebra):
    #   (xhat*gamma + beta) @ w1 + b1 == xhat @ (diag(gamma) @ w1) + (beta@w1 + b1)
    g = gamma.reshape(-1, 1).astype(jnp.float32)
    w1f = w1.astype(jnp.float32)
    w1_eff = g * w1f                                              # (in_dim, hidden)
    b1_eff = (b1.reshape(1, -1).astype(jnp.float32)
              + beta.reshape(1, -1).astype(jnp.float32) @ w1f)    # (1, hidden)

    w2_in = w2.astype(mxu_dtype)      # halve w2 DMA/VMEM on the bf16 path
    b2_in = b2.reshape(1, -1).astype(jnp.float32)

    if in_dim == 2:
        # xhat1 == -xhat0 -> single broadcast FMA with the row difference.
        w1_in = w1_eff[0:1, :] - w1_eff[1:2, :]                   # (1, hidden) f32
        kernel = functools.partial(_ffn_kernel_c2, eps=eps,
                                   mxu_dtype=mxu_dtype,
                                   gelu_approx=gelu_approximate)
        w1_spec = pl.BlockSpec((1, hidden), lambda i: (0, 0))
    else:
        w1_in = w1_eff.astype(mxu_dtype)
        kernel = functools.partial(_ffn_kernel_general, eps=eps,
                                   inv_d=1.0 / float(in_dim),
                                   mxu_dtype=mxu_dtype,
                                   gelu_approx=gelu_approximate)
        w1_spec = pl.BlockSpec((in_dim, hidden), lambda i: (0, 0))

    out = pl.pallas_call(
        kernel,
        out_shape=jax.ShapeDtypeStruct((n, out_dim), out_dtype),
        grid_spec=pltpu.PrefetchScalarGridSpec(
            num_scalar_prefetch=0,
            grid=grid,
            in_specs=[
                pl.BlockSpec((tm, in_dim), lambda i: (i, 0)),        # x rows
                w1_spec,                                             # w1 (folded)
                pl.BlockSpec((1, hidden), lambda i: (0, 0)),         # b1_eff
                pl.BlockSpec((hidden, out_dim), lambda i: (0, 0)),   # w2
                pl.BlockSpec((1, out_dim), lambda i: (0, 0)),        # b2
            ],
            out_specs=pl.BlockSpec((tm, out_dim), lambda i: (i, 0)),
        ),
        compiler_params=pltpu.CompilerParams(
            dimension_semantics=("parallel",)),
    )(xf, w1_in, b1_eff, w2_in, b2_in)

    return out.reshape(*lead, out_dim)


def init_params(key, in_dim, hidden, out_dim, dtype=jnp.float32):
    k1, k2, k3, k4, k5, k6 = jax.random.split(key, 6)
    # Non-trivial gamma/beta so the affine fold is actually exercised.
    gamma = jax.random.uniform(k5, (1, in_dim), dtype, 0.5, 1.5)
    beta = jax.random.uniform(k6, (1, in_dim), dtype, -0.5, 0.5)
    lim1 = 1.0 / np.sqrt(in_dim)
    w1 = jax.random.uniform(k1, (in_dim, hidden), dtype, -lim1, lim1)
    b1 = jax.random.uniform(k2, (1, hidden), dtype, -lim1, lim1)
    lim2 = 1.0 / np.sqrt(hidden)
    w2 = jax.random.uniform(k3, (hidden, out_dim), dtype, -lim2, lim2)
    b2 = jax.random.uniform(k4, (1, out_dim), dtype, -lim2, lim2)
    return gamma, beta, w1, b1, w2, b2


def _reference(x, params, eps=1e-5, approximate=False):
    gamma, beta, w1, b1, w2, b2 = params
    mean = jnp.mean(x, axis=-1, keepdims=True)
    var = jnp.mean((x - mean) ** 2, axis=-1, keepdims=True)
    xn = (x - mean) / jnp.sqrt(var + eps)
    xn = xn * gamma.reshape(-1) + beta.reshape(-1)
    h = xn @ w1 + b1.reshape(-1)
    h = jax.nn.gelu(h, approximate=approximate)
    return h @ w2 + b2.reshape(-1)


if __name__ == "__main__":
    key = jax.random.PRNGKey(0)
    k1, k2, k3, k4, k5 = jax.random.split(key, 5)

    # ---- Case 1: channel-width (in_dim=2) fast path --------------------------
    b, sp, seq_len = 2, 4, 40
    in_dim, hidden, out_dim = 2, 128, 128
    x2 = jax.random.normal(k1, (b, sp, seq_len, in_dim), jnp.float32)
    p2 = init_params(k2, in_dim, hidden, out_dim)

    y_ref = _reference(x2, p2, approximate=False)
    y = jax.block_until_ready(fused_layernorm_mlp(x2, p2))
    assert y.shape == (b, sp, seq_len, out_dim)
    np.testing.assert_allclose(np.asarray(y), np.asarray(y_ref),
                               rtol=1e-5, atol=1e-5)

    # Fast variant: bf16 MXU (valid on v5e too) + tanh GELU + bf16 output.
    y_fast = jax.block_until_ready(
        fused_layernorm_mlp(x2, p2, matmul_dtype=jnp.bfloat16,
                            gelu_approximate=True, out_dtype=jnp.bfloat16))
    y_ref_t = _reference(x2, p2, approximate=True)
    np.testing.assert_allclose(np.asarray(y_fast.astype(jnp.float32)),
                               np.asarray(y_ref_t), rtol=5e-2, atol=5e-2)

    # ---- Case 2: d_model-width feed_forward (256 -> 512 -> 256) --------------
    b2_, sp2, l2 = 2, 2, 16
    d_model, d_ff = 256, 512
    xd = jax.random.normal(k3, (b2_, sp2, l2, d_model), jnp.float32)
    p_ff = init_params(k4, d_model, d_ff, d_model)
    y_ff = jax.block_until_ready(fused_layernorm_mlp(xd, p_ff))
    np.testing.assert_allclose(np.asarray(y_ff),
                               np.asarray(_reference(xd, p_ff)),
                               rtol=1e-4, atol=1e-4)

    # ---- Case 3: head (256 -> 256 -> 2) ---------------------------------------
    p_head = init_params(k5, d_model, d_model, 2)
    y_head = jax.block_until_ready(fused_layernorm_mlp(xd, p_head))
    assert y_head.shape == (b2_, sp2, l2, 2)
    np.testing.assert_allclose(np.asarray(y_head),
                               np.asarray(_reference(xd, p_head)),
                               rtol=1e-4, atol=1e-4)

    print("KERNEL_OK")
</pallas_src>

<mosaic_0001>
module attributes {stable_mosaic.version = 11 : i64} {
  func.func @_ffn_kernel_c2(%arg0: i32, %arg1: memref<160x2xf32, #tpu.memory_space<vmem>>, %arg2: memref<1x128xf32, #tpu.memory_space<vmem>>, %arg3: memref<1x128xf32, #tpu.memory_space<vmem>>, %arg4: memref<128x128xf32, #tpu.memory_space<vmem>>, %arg5: memref<1x128xf32, #tpu.memory_space<vmem>>, %arg6: memref<160x128xf32, #tpu.memory_space<vmem>>) attributes {dimension_semantics = [#tpu.dimension_semantics<parallel>], iteration_bounds = array<i64: 2>, scalar_prefetch = 0 : i64, scratch_operands = 0 : i64, tpu.core_type = #tpu.core_type<tc>, window_params = [{transform_indices = @transform_0, window_bounds = array<i64: 160, 2>}, {pipeline_mode = #tpu.pipeline_mode<synchronous>, transform_indices = @transform_1, window_bounds = array<i64: 1, 128>}, {pipeline_mode = #tpu.pipeline_mode<synchronous>, transform_indices = @transform_2, window_bounds = array<i64: 1, 128>}, {pipeline_mode = #tpu.pipeline_mode<synchronous>, transform_indices = @transform_3, window_bounds = array<i64: 128, 128>}, {pipeline_mode = #tpu.pipeline_mode<synchronous>, transform_indices = @transform_4, window_bounds = array<i64: 1, 128>}, {transform_indices = @transform_5, window_bounds = array<i64: 160, 128>}]} {
    %c0 = arith.constant 0 : index
    %c0_0 = arith.constant 0 : index
    %0 = vector.load %arg1[%c0, %c0_0] : memref<160x2xf32, #tpu.memory_space<vmem>>, vector<160x2xf32>
    %1 = vector.extract_strided_slice %0 {offsets = [0, 0], sizes = [160, 1], strides = [1, 1]} : vector<160x2xf32> to vector<160x1xf32>
    %2 = vector.extract_strided_slice %0 {offsets = [0, 1], sizes = [160, 1], strides = [1, 1]} : vector<160x2xf32> to vector<160x1xf32>
    %3 = arith.subf %1, %2 : vector<160x1xf32>
    %cst = arith.constant 5.000000e-01 : f32
    %4 = vector.broadcast %cst : f32 to vector<160x1xf32>
    %5 = arith.mulf %4, %3 : vector<160x1xf32>
    %6 = arith.mulf %5, %5 : vector<160x1xf32>
    %cst_1 = arith.constant 9.99999974E-6 : f32
    %7 = vector.broadcast %cst_1 : f32 to vector<160x1xf32>
    %8 = arith.addf %6, %7 : vector<160x1xf32>
    %9 = math.rsqrt %8 : vector<160x1xf32>
    %10 = arith.mulf %5, %9 : vector<160x1xf32>
    %c0_2 = arith.constant 0 : index
    %c0_3 = arith.constant 0 : index
    %11 = vector.load %arg2[%c0_2, %c0_3] : memref<1x128xf32, #tpu.memory_space<vmem>>, vector<1x128xf32>
    %12 = vector.broadcast %10 : vector<160x1xf32> to vector<160x128xf32>
    %13 = vector.broadcast %11 : vector<1x128xf32> to vector<160x128xf32>
    %14 = arith.mulf %12, %13 : vector<160x128xf32>
    %c0_4 = arith.constant 0 : index
    %c0_5 = arith.constant 0 : index
    %15 = vector.load %arg3[%c0_4, %c0_5] : memref<1x128xf32, #tpu.memory_space<vmem>>, vector<1x128xf32>
    %16 = vector.broadcast %15 : vector<1x128xf32> to vector<160x128xf32>
    %17 = arith.addf %14, %16 : vector<160x128xf32>
    %cst_6 = arith.constant 5.000000e-01 : f32
    %18 = vector.broadcast %cst_6 : f32 to vector<160x128xf32>
    %19 = arith.mulf %18, %17 : vector<160x128xf32>
    %cst_7 = arith.constant 0.707106769 : f32
    %20 = vector.broadcast %cst_7 : f32 to vector<160x128xf32>
    %21 = arith.mulf %17, %20 : vector<160x128xf32>
    %22 = math.erf %21 : vector<160x128xf32>
    %cst_8 = arith.constant 1.000000e+00 : f32
    %23 = vector.broadcast %cst_8 : f32 to vector<160x128xf32>
    %24 = arith.addf %23, %22 : vector<160x128xf32>
    %25 = arith.mulf %19, %24 : vector<160x128xf32>
    %c0_9 = arith.constant 0 : index
    %c0_10 = arith.constant 0 : index
    %26 = vector.load %arg4[%c0_9, %c0_10] : memref<128x128xf32, #tpu.memory_space<vmem>>, vector<128x128xf32>
    %cst_11 = arith.constant dense<0.000000e+00> : vector<160x128xf32>
    %27 = tpu.matmul %25, %26, %cst_11 {dimension_numbers = #tpu.dot_dimension_numbers<[1], [0], [0], [1], [0, 0, 1, 1], [], []>} : vector<160x128xf32>, vector<128x128xf32>, vector<160x128xf32> -> vector<160x128xf32>
    %c0_12 = arith.constant 0 : index
    %c0_13 = arith.constant 0 : index
    %28 = vector.load %arg5[%c0_12, %c0_13] : memref<1x128xf32, #tpu.memory_space<vmem>>, vector<1x128xf32>
    %29 = vector.broadcast %28 : vector<1x128xf32> to vector<160x128xf32>
    %30 = arith.addf %27, %29 : vector<160x128xf32>
    %c0_14 = arith.constant 0 : index
    %c0_15 = arith.constant 0 : index
    %31 = vector.load %arg6[%c0_14, %c0_15] : memref<160x128xf32, #tpu.memory_space<vmem>>, vector<160x128xf32>
    tpu.vector_store %arg6[%c0_14, %c0_15], %30 {strides = array<i32>} : memref<160x128xf32, #tpu.memory_space<vmem>>, vector<160x128xf32>,
    return
  }
  func.func @transform_0(%arg0: i32) -> (i32, i32) {
    %c0_i32 = arith.constant 0 : i32
    %c0_i32_0 = arith.constant 0 : i32
    return %arg0, %c0_i32 : i32, i32
  }
  func.func @transform_1(%arg0: i32) -> (i32, i32) {
    %c0_i32 = arith.constant 0 : i32
    %c0_i32_0 = arith.constant 0 : i32
    %c0_i32_1 = arith.constant 0 : i32
    return %c0_i32, %c0_i32_0 : i32, i32
  }
  func.func @transform_2(%arg0: i32) -> (i32, i32) {
    %c0_i32 = arith.constant 0 : i32
    %c0_i32_0 = arith.constant 0 : i32
    %c0_i32_1 = arith.constant 0 : i32
    return %c0_i32, %c0_i32_0 : i32, i32
  }
  func.func @transform_3(%arg0: i32) -> (i32, i32) {
    %c0_i32 = arith.constant 0 : i32
    %c0_i32_0 = arith.constant 0 : i32
    %c0_i32_1 = arith.constant 0 : i32
    return %c0_i32, %c0_i32_0 : i32, i32
  }
  func.func @transform_4(%arg0: i32) -> (i32, i32) {
    %c0_i32 = arith.constant 0 : i32
    %c0_i32_0 = arith.constant 0 : i32
    %c0_i32_1 = arith.constant 0 : i32
    return %c0_i32, %c0_i32_0 : i32, i32
  }
  func.func @transform_5(%arg0: i32) -> (i32, i32) {
    %c0_i32 = arith.constant 0 : i32
    %c0_i32_0 = arith.constant 0 : i32
    return %arg0, %c0_i32 : i32, i32
  }
}

</mosaic_0001>

<llo_original>
// kernel: tpu_custom_call.1
$region0: #{tpu_custom_call.1}
  #allocation0 [shape = 'u32[]', space=smem, size = 0x4, offset = 0x4, fixed_abs, tag = 'smem constant byte address 0x4 - core index']
  #allocation1 [shape = 'u32[144,128]{1,0:T(1,128)}', space=vmem, size = 0x12000, scoped, tag = 'internal scratch']
  %s0 = inlined_call_operand.vmem [shape: f32[320,2], index: 0, kind: input, shape index: {}]
  %s1 = inlined_call_operand.vmem [shape: f32[1,128], index: 1, kind: input, shape index: {}]
  %s2 = inlined_call_operand.vmem [shape: f32[1,128], index: 2, kind: input, shape index: {}]
  %s3 = inlined_call_operand.vmem [shape: f32[128,128], index: 3, kind: input, shape index: {}]
  %s4 = inlined_call_operand.vmem [shape: f32[1,128], index: 4, kind: input, shape index: {}]
  %s5 = inlined_call_operand.hbm [shape: f32[320,128], index: 5, kind: output, shape index: {}]
  %s6 = sld [smem:[#allocation0]]
  $region53: #{tpu_custom_call.1} parent=0
    _
  %s8 = ssub.s32 1, %s6
  %s9 = scalar_select 0, %s8, %s6
  $region1: #{tpu_custom_call.1} parent=0
    #allocation2 [shape = 'u8[163840]{0}', space=vmem, size = 0x28000, scoped, tag = 'output window, operand 0']
    #allocation3 [shape = 's32[2]{0}', space=sflag, size = 0x8, scoped, tag = 'scoped memory for tpu_custom_call.1']
    %10 = vsyncpa [#allocation3], 0
    %s11 = scalar_lea.sflag [#allocation3], 1
    %12 = vsyncpa %s11, 0
    loop: start=0, step=1, limit=4
    $region2: #{tpu_custom_call.1} parent=1 // loop_pre_header
      _
    $region3: #{tpu_custom_call.1} parent=1 // loop_header
      %s14 = sphi 0, %s18
      %p15 = scmp.ge.s32.totalorder %s14, 4
      %s24 = sphi 0, %s26
      %s27 = sphi 0, %s24
      %s28 = sphi 0, %s27
      %s44 = sphi 0, %s28
      %s48 = sphi 0, %s48
      %s50 = sphi 0, %s48
      %s51 = sphi 0, %s50
      %s65 = sphi 0, %s51
      %s69 = sphi 0, %s69
      %s71 = sphi 0, %s69
      %s72 = sphi 0, %s71
      %s86 = sphi 0, %s72
      %s90 = sphi 0, %s90
      %s92 = sphi 0, %s90
      %s93 = sphi 0, %s92
      %s107 = sphi 0, %s93
      %s111 = sphi 0, %s111
      %s113 = sphi 0, %s111
      %s114 = sphi 0, %s113
      %s128 = sphi 0, %s114
      %s134 = sphi 0, %s136
      %s137 = sphi 0, %s134
      %s138 = sphi 0, %s137
      %s154 = sphi 0, %s138
    $region4: #{tpu_custom_call.1} parent=1 // loop_header_branch
      %17 = sbr.rel (%p15) target = $region8
    $region5: #{tpu_custom_call.1} parent=1 // loop_body
      %s19 = ssub.s32 %s14, 1
      %s20 = ssub.s32 %s14, 2
      %s21 = sadd.s32 %s14, 1
      %s22 = ssub.s32 %s14, %s21
      %p23 = scmp.eq.s32.totalorder %s22, 0
      %s25 = sadd.s32 %s24, 1
      %s26 = scalar_select %p23, %s24, %s25
      %p29 = pneg %p23
      %p30 = scmp.eq.s32.totalorder %s14, 1
      %p31 = por %p29, %p30
      %p32 = scmp.ne.s32.totalorder %s24, %s27
      %p33 = scmp.eq.s32.totalorder %s14, 0
      %p34 = por %p32, %p33
      %p35 = scmp.ne.s32.totalorder %s24, %s27
      %p36 = scmp.eq.s32.totalorder %s19, 1
      %p37 = por %p35, %p36
      %p38 = scmp.ne.s32.totalorder %s27, %s28
      %p39 = scmp.eq.s32.totalorder %s19, 0
      %p40 = por %p38, %p39
      %p41 = scmp.ne.s32.totalorder %s27, %s28
      %p42 = scmp.eq.s32.totalorder %s20, 1
      %p43 = por %p41, %p42
      %p45 = scmp.ne.s32.totalorder %s28, %s44
      %p46 = scmp.eq.s32.totalorder %s20, 0
      %p47 = por %p45, %p46
      %s49 = sadd.s32 %s48, 1
      %p52 = scmp.eq.s32.totalorder %s14, 1
      %p53 = scmp.ne.s32.totalorder %s48, %s50
      %p54 = scmp.eq.s32.totalorder %s14, 0
      %p55 = por %p53, %p54
      %p56 = scmp.ne.s32.totalorder %s48, %s50
      %p57 = scmp.eq.s32.totalorder %s19, 1
      %p58 = por %p56, %p57
      %p59 = scmp.ne.s32.totalorder %s50, %s51
      %p60 = scmp.eq.s32.totalorder %s19, 0
      %p61 = por %p59, %p60
      %p62 = scmp.ne.s32.totalorder %s50, %s51
      %p63 = scmp.eq.s32.totalorder %s20, 1
      %p64 = por %p62, %p63
      %p66 = scmp.ne.s32.totalorder %s51, %s65
      %p67 = scmp.eq.s32.totalorder %s20, 0
      %p68 = por %p66, %p67
      %s70 = sadd.s32 %s69, 1
      %p73 = scmp.eq.s32.totalorder %s14, 1
      %p74 = scmp.ne.s32.totalorder %s69, %s71
      %p75 = scmp.eq.s32.totalorder %s14, 0
      %p76 = por %p74, %p75
      %p77 = scmp.ne.s32.totalorder %s69, %s71
      %p78 = scmp.eq.s32.totalorder %s19, 1
      %p79 = por %p77, %p78
      %p80 = scmp.ne.s32.totalorder %s71, %s72
      %p81 = scmp.eq.s32.totalorder %s19, 0
      %p82 = por %p80, %p81
      %p83 = scmp.ne.s32.totalorder %s71, %s72
      %p84 = scmp.eq.s32.totalorder %s20, 1
      %p85 = por %p83, %p84
      %p87 = scmp.ne.s32.totalorder %s72, %s86
      %p88 = scmp.eq.s32.totalorder %s20, 0
      %p89 = por %p87, %p88
      %s91 = sadd.s32 %s90, 1
      %p94 = scmp.eq.s32.totalorder %s14, 1
      %p95 = scmp.ne.s32.totalorder %s90, %s92
      %p96 = scmp.eq.s32.totalorder %s14, 0
      %p97 = por %p95, %p96
      %p98 = scmp.ne.s32.totalorder %s90, %s92
      %p99 = scmp.eq.s32.totalorder %s19, 1
      %p100 = por %p98, %p99
      %p101 = scmp.ne.s32.totalorder %s92, %s93
      %p102 = scmp.eq.s32.totalorder %s19, 0
      %p103 = por %p101, %p102
      %p104 = scmp.ne.s32.totalorder %s92, %s93
      %p105 = scmp.eq.s32.totalorder %s20, 1
      %p106 = por %p104, %p105
      %p108 = scmp.ne.s32.totalorder %s93, %s107
      %p109 = scmp.eq.s32.totalorder %s20, 0
      %p110 = por %p108, %p109
      %s112 = sadd.s32 %s111, 1
      %p115 = scmp.eq.s32.totalorder %s14, 1
      %p116 = scmp.ne.s32.totalorder %s111, %s113
      %p117 = scmp.eq.s32.totalorder %s14, 0
      %p118 = por %p116, %p117
      %p119 = scmp.ne.s32.totalorder %s111, %s113
      %p120 = scmp.eq.s32.totalorder %s19, 1
      %p121 = por %p119, %p120
      %p122 = scmp.ne.s32.totalorder %s113, %s114
      %p123 = scmp.eq.s32.totalorder %s19, 0
      %p124 = por %p122, %p123
      %p125 = scmp.ne.s32.totalorder %s113, %s114
      %p126 = scmp.eq.s32.totalorder %s20, 1
      %p127 = por %p125, %p126
      %p129 = scmp.ne.s32.totalorder %s114, %s128
      %p130 = scmp.eq.s32.totalorder %s20, 0
      %p131 = por %p129, %p130
      %s132 = ssub.s32 %s14, %s21
      %p133 = scmp.eq.s32.totalorder %s132, 0
      %s135 = sadd.s32 %s134, 1
      %s136 = scalar_select %p133, %s134, %s135
      %p139 = pneg %p133
      %p140 = scmp.eq.s32.totalorder %s14, 1
      %p141 = por %p139, %p140
      %p142 = scmp.ne.s32.totalorder %s134, %s137
      %p143 = scmp.eq.s32.totalorder %s14, 0
      %p144 = por %p142, %p143
      %p145 = scmp.ne.s32.totalorder %s134, %s137
      %p146 = scmp.eq.s32.totalorder %s19, 1
      %p147 = por %p145, %p146
      %p148 = scmp.ne.s32.totalorder %s137, %s138
      %p149 = scmp.eq.s32.totalorder %s19, 0
      %p150 = por %p148, %p149
      %p151 = scmp.ne.s32.totalorder %s137, %s138
      %p152 = scmp.eq.s32.totalorder %s20, 1
      %p153 = por %p151, %p152
      %p155 = scmp.ne.s32.totalorder %s138, %s154
      %p156 = scmp.eq.s32.totalorder %s20, 0
      %p157 = por %p155, %p156
      %p158 = scmp.le.s32.totalorder 1, %s14
      %p159 = scmp.lt.s32.totalorder %s14, 3
      %p160 = pnand %p158, %p159
      %p161 = pneg %p160
      // Predicated region
      $region9: #{tpu_custom_call.1} parent=5 // pred_check
        _
      $region10: #{tpu_custom_call.1} parent=5 // pred_check_branch
        %163 = sbr.rel (%p160) target = $region12
      $region11: #{tpu_custom_call.1} parent=5 // pred_region
        %s164 = ssub.s32 %s14, 1
        // Predicated region
        $region13: #{tpu_custom_call.1} parent=11 // pred_check
          %p165 = pneg %p61
        $region14: #{tpu_custom_call.1} parent=11 // pred_check_branch
          %167 = sbr.rel (%p165) target = $region16
        $region15: #{tpu_custom_call.1} parent=11 // pred_region
          _
        $region16: #{tpu_custom_call.1} parent=11 // pred_fallthru
          _
        // Predicated region
        $region17: #{tpu_custom_call.1} parent=11 // pred_check
          %p168 = pneg %p82
        $region18: #{tpu_custom_call.1} parent=11 // pred_check_branch
          %170 = sbr.rel (%p168) target = $region20
        $region19: #{tpu_custom_call.1} parent=11 // pred_region
          _
        $region20: #{tpu_custom_call.1} parent=11 // pred_fallthru
          _
        // Predicated region
        $region21: #{tpu_custom_call.1} parent=11 // pred_check
          %p171 = pneg %p103
        $region22: #{tpu_custom_call.1} parent=11 // pred_check_branch
          %173 = sbr.rel (%p171) target = $region24
        $region23: #{tpu_custom_call.1} parent=11 // pred_region
          _
        $region24: #{tpu_custom_call.1} parent=11 // pred_fallthru
          _
        // Predicated region
        $region25: #{tpu_custom_call.1} parent=11 // pred_check
          %p174 = pneg %p124
        $region26: #{tpu_custom_call.1} parent=11 // pred_check_branch
          %176 = sbr.rel (%p174) target = $region28
        $region27: #{tpu_custom_call.1} parent=11 // pred_region
          _
        $region28: #{tpu_custom_call.1} parent=11 // pred_fallthru
          _
      $region12: #{tpu_custom_call.1} parent=5 // pred_fallthru
        _
      %p177 = scmp.lt.s32.totalorder %s14, 2
      // Predicated region
      $region29: #{tpu_custom_call.1} parent=5 // pred_check
        %p178 = pneg %p177
      $region30: #{tpu_custom_call.1} parent=5 // pred_check_branch
        %180 = sbr.rel (%p178) target = $region32
      $region31: #{tpu_custom_call.1} parent=5 // pred_region
        // Predicated region
        $region33: #{tpu_custom_call.1} parent=31 // pred_check
          %p181 = pneg %p34
        $region34: #{tpu_custom_call.1} parent=31 // pred_check_branch
          %183 = sbr.rel (%p181) target = $region36
        $region35: #{tpu_custom_call.1} parent=31 // pred_region
          %s184 = smul.u32 20, %s14
          %p185 = scmp.lt.s32.totalorder %s184, 39
          %s186 = scalar_select %p185, %s184, 39
          %s187 = smul.addr %s186, 8
          %s188 = scalar_lea.vmem %s0, %s187
          %s189 = smul.u32 20, %s14
        $region36: #{tpu_custom_call.1} parent=31 // pred_fallthru
          _
      $region32: #{tpu_custom_call.1} parent=5 // pred_fallthru
        _
      %p190 = scmp.le.s32.totalorder 1, %s14
      %p191 = scmp.lt.s32.totalorder %s14, 3
      %p192 = pnand %p190, %p191
      %p193 = pneg %p192
      // Predicated region
      $region37: #{tpu_custom_call.1} parent=5 // pred_check
        _
      $region38: #{tpu_custom_call.1} parent=5 // pred_check_branch
        %195 = sbr.rel (%p192) target = $region40
      $region39: #{tpu_custom_call.1} parent=5 // pred_region
        %s196 = ssub.s32 %s14, 1
        %s197 = smul.u32 20, %s19
        %p198 = scmp.lt.s32.totalorder %s197, 39
        %s199 = scalar_select %p198, %s197, 39
        %s200 = smul.addr %s199, 8
        %s201 = scalar_lea.vmem %s0, %s200
        %p202 = pneg %p40
        %p203 = pneg %p37
        %p204 = pneg %p61
        %p205 = pneg %p58
        %p206 = pneg %p82
        %p207 = pneg %p79
        %p208 = pneg %p103
        %p209 = pneg %p100
        %p210 = pneg %p124
        %p211 = pneg %p121
        %p212 = pneg %p150
        %p213 = pneg %p147
        %s214 = sand.u32 %s137, 1
        %s215 = scalar_lea.sflag [#allocation3], %s214
        %s216 = sand.u32 %s137, 1
        %s217 = smul.addr %s216, 160
        %s218 = scalar_lea.vmem [#allocation2], %s217
        %s219 = smul.u32 20, %s19
        %p220 = scmp.lt.s32.totalorder %s219, 39
        %s221 = scalar_select %p220, %s219, 39
        %s222 = smul.addr %s221, 8
        %s223 = scalar_lea.vmem %s0, %s222
        %s224 = smul.u32 20, %s19
        %s225 = smul.u32 20, %s19
        %v226 = vld [vmem:[%s223] sm:$0xff]
        %v227 = vld [vmem:[%s223 + $0x8] sm:$0xff]
        %v228 = vld [vmem:[%s223 + $0x10] sm:$0xff]
        %v229 = vld [vmem:[%s223 + $0x18] sm:$0xff]
        %v230 = vld [vmem:[%s223 + $0x20] sm:$0xff]
        %v231 = vld [vmem:[%s223 + $0x28] sm:$0xff]
        %v232 = vld [vmem:[%s223 + $0x30] sm:$0xff]
        %v233 = vld [vmem:[%s223 + $0x38] sm:$0xff]
        %v234 = vld [vmem:[%s223 + $0x40] sm:$0xff]
        %v235 = vld [vmem:[%s223 + $0x48] sm:$0xff]
        %v236 = vld [vmem:[%s223 + $0x50] sm:$0xff]
        %v237 = vld [vmem:[%s223 + $0x58] sm:$0xff]
        %v238 = vld [vmem:[%s223 + $0x60] sm:$0xff]
        %v239 = vld [vmem:[%s223 + $0x68] sm:$0xff]
        %v240 = vld [vmem:[%s223 + $0x70] sm:$0xff]
        %v241 = vld [vmem:[%s223 + $0x78] sm:$0xff]
        %v242 = vld [vmem:[%s223 + $0x80] sm:$0xff]
        %v243 = vld [vmem:[%s223 + $0x88] sm:$0xff]
        %v244 = vld [vmem:[%s223 + $0x90] sm:$0xff]
        %v245 = vld [vmem:[%s223 + $0x98] sm:$0xff]
        %266 = vrot.lane.b32.xlu0 %v226, 127
        %v267 = vpop.permute.xlu0 %266
        %268 = vrot.lane.b32.xlu0 %v227, 127
        %v269 = vpop.permute.xlu0 %268
        %270 = vrot.lane.b32.xlu0 %v228, 127
        %v271 = vpop.permute.xlu0 %270
        %272 = vrot.lane.b32.xlu0 %v229, 127
        %v273 = vpop.permute.xlu0 %272
        %274 = vrot.lane.b32.xlu0 %v230, 127
        %v275 = vpop.permute.xlu0 %274
        %276 = vrot.lane.b32.xlu0 %v231, 127
        %v277 = vpop.permute.xlu0 %276
        %278 = vrot.lane.b32.xlu0 %v232, 127
        %v279 = vpop.permute.xlu0 %278
        %280 = vrot.lane.b32.xlu0 %v233, 127
        %v281 = vpop.permute.xlu0 %280
        %282 = vrot.lane.b32.xlu0 %v234, 127
        %v283 = vpop.permute.xlu0 %282
        %284 = vrot.lane.b32.xlu0 %v235, 127
        %v285 = vpop.permute.xlu0 %284
        %286 = vrot.lane.b32.xlu0 %v236, 127
        %v287 = vpop.permute.xlu0 %286
        %288 = vrot.lane.b32.xlu0 %v237, 127
        %v289 = vpop.permute.xlu0 %288
        %290 = vrot.lane.b32.xlu0 %v238, 127
        %v291 = vpop.permute.xlu0 %290
        %292 = vrot.lane.b32.xlu0 %v239, 127
        %v293 = vpop.permute.xlu0 %292
        %294 = vrot.lane.b32.xlu0 %v240, 127
        %v295 = vpop.permute.xlu0 %294
        %296 = vrot.lane.b32.xlu0 %v241, 127
        %v297 = vpop.permute.xlu0 %296
        %298 = vrot.lane.b32.xlu0 %v242, 127
        %v299 = vpop.permute.xlu0 %298
        %300 = vrot.lane.b32.xlu0 %v243, 127
        %v301 = vpop.permute.xlu0 %300
        %302 = vrot.lane.b32.xlu0 %v244, 127
        %v303 = vpop.permute.xlu0 %302
        %304 = vrot.lane.b32.xlu0 %v245, 127
        %v305 = vpop.permute.xlu0 %304
        %v326 = vsub.f32 %v226, %v267
        %v327 = vsub.f32 %v227, %v269
        %v328 = vsub.f32 %v228, %v271
        %v329 = vsub.f32 %v229, %v273
        %v330 = vsub.f32 %v230, %v275
        %v331 = vsub.f32 %v231, %v277
        %v332 = vsub.f32 %v232, %v279
        %v333 = vsub.f32 %v233, %v281
        %v334 = vsub.f32 %v234, %v283
        %v335 = vsub.f32 %v235, %v285
        %v336 = vsub.f32 %v236, %v287
        %v337 = vsub.f32 %v237, %v289
        %v338 = vsub.f32 %v238, %v291
        %v339 = vsub.f32 %v239, %v293
        %v340 = vsub.f32 %v240, %v295
        %v341 = vsub.f32 %v241, %v297
        %v342 = vsub.f32 %v242, %v299
        %v343 = vsub.f32 %v243, %v301
        %v344 = vsub.f32 %v244, %v303
        %v345 = vsub.f32 %v245, %v305
        %v346 = vmul.f32 %v326, 0.5
        %v347 = vmul.f32 %v327, 0.5
        %v348 = vmul.f32 %v328, 0.5
        %v349 = vmul.f32 %v329, 0.5
        %v350 = vmul.f32 %v330, 0.5
        %v351 = vmul.f32 %v331, 0.5
        %v352 = vmul.f32 %v332, 0.5
        %v353 = vmul.f32 %v333, 0.5
        %v354 = vmul.f32 %v334, 0.5
        %v355 = vmul.f32 %v335, 0.5
        %v356 = vmul.f32 %v336, 0.5
        %v357 = vmul.f32 %v337, 0.5
        %v358 = vmul.f32 %v338, 0.5
        %v359 = vmul.f32 %v339, 0.5
        %v360 = vmul.f32 %v340, 0.5
        %v361 = vmul.f32 %v341, 0.5
        %v362 = vmul.f32 %v342, 0.5
        %v363 = vmul.f32 %v343, 0.5
        %v364 = vmul.f32 %v344, 0.5
        %v365 = vmul.f32 %v345, 0.5
        %v366 = vmul.f32 %v346, %v346
        %v367 = vmul.f32 %v347, %v347
        %v368 = vmul.f32 %v348, %v348
        %v369 = vmul.f32 %v349, %v349
        %v370 = vmul.f32 %v350, %v350
        %v371 = vmul.f32 %v351, %v351
        %v372 = vmul.f32 %v352, %v352
        %v373 = vmul.f32 %v353, %v353
        %v374 = vmul.f32 %v354, %v354
        %v375 = vmul.f32 %v355, %v355
        %v376 = vmul.f32 %v356, %v356
        %v377 = vmul.f32 %v357, %v357
        %v378 = vmul.f32 %v358, %v358
        %v379 = vmul.f32 %v359, %v359
        %v380 = vmul.f32 %v360, %v360
        %v381 = vmul.f32 %v361, %v361
        %v382 = vmul.f32 %v362, %v362
        %v383 = vmul.f32 %v363, %v363
        %v384 = vmul.f32 %v364, %v364
        %v385 = vmul.f32 %v365, %v365
        %v386 = vadd.f32 %v366, 1e-05
        %v387 = vadd.f32 %v367, 1e-05
        %v388 = vadd.f32 %v368, 1e-05
        %v389 = vadd.f32 %v369, 1e-05
        %v390 = vadd.f32 %v370, 1e-05
        %v391 = vadd.f32 %v371, 1e-05
        %v392 = vadd.f32 %v372, 1e-05
        %v393 = vadd.f32 %v373, 1e-05
        %v394 = vadd.f32 %v374, 1e-05
        %v395 = vadd.f32 %v375, 1e-05
        %v396 = vadd.f32 %v376, 1e-05
        %v397 = vadd.f32 %v377, 1e-05
        %v398 = vadd.f32 %v378, 1e-05
        %v399 = vadd.f32 %v379, 1e-05
        %v400 = vadd.f32 %v380, 1e-05
        %v401 = vadd.f32 %v381, 1e-05
        %v402 = vadd.f32 %v382, 1e-05
        %v403 = vadd.f32 %v383, 1e-05
        %v404 = vadd.f32 %v384, 1e-05
        %v405 = vadd.f32 %v385, 1e-05
        %v406 = vrsqrt.pop %v386
        %v407 = vrsqrt.pop %v387
        %v408 = vrsqrt.pop %v388
        %v409 = vrsqrt.pop %v389
        %v410 = vrsqrt.pop %v390
        %v411 = vrsqrt.pop %v391
        %v412 = vrsqrt.pop %v392
        %v413 = vrsqrt.pop %v393
        %v414 = vrsqrt.pop %v394
        %v415 = vrsqrt.pop %v395
        %v416 = vrsqrt.pop %v396
        %v417 = vrsqrt.pop %v397
        %v418 = vrsqrt.pop %v398
        %v419 = vrsqrt.pop %v399
        %v420 = vrsqrt.pop %v400
        %v421 = vrsqrt.pop %v401
        %v422 = vrsqrt.pop %v402
        %v423 = vrsqrt.pop %v403
        %v424 = vrsqrt.pop %v404
        %v425 = vrsqrt.pop %v405
        %v426 = vmul.f32 %v346, %v406
        %v427 = vmul.f32 %v347, %v407
        %v428 = vmul.f32 %v348, %v408
        %v429 = vmul.f32 %v349, %v409
        %v430 = vmul.f32 %v350, %v410
        %v431 = vmul.f32 %v351, %v411
        %v432 = vmul.f32 %v352, %v412
        %v433 = vmul.f32 %v353, %v413
        %v434 = vmul.f32 %v354, %v414
        %v435 = vmul.f32 %v355, %v415
        %v436 = vmul.f32 %v356, %v416
        %v437 = vmul.f32 %v357, %v417
        %v438 = vmul.f32 %v358, %v418
        %v439 = vmul.f32 %v359, %v419
        %v440 = vmul.f32 %v360, %v420
        %v441 = vmul.f32 %v361, %v421
        %v442 = vmul.f32 %v362, %v422
        %v443 = vmul.f32 %v363, %v423
        %v444 = vmul.f32 %v364, %v424
        %v445 = vmul.f32 %v365, %v425
        %v446 = vld [vmem:[%s1] sm:$0x1]
        %448 = vset.pattern.permute.xlu0 0
        %449 = vperm.xlu0 %448, %v426
        %v450 = vpop.permute.xlu0 %449
        %453 = vset.pattern.permute.xlu0 0
        %454 = vperm.xlu0 %453, %v427
        %v455 = vpop.permute.xlu0 %454
        %458 = vset.pattern.permute.xlu0 0
        %459 = vperm.xlu0 %458, %v428
        %v460 = vpop.permute.xlu0 %459
        %463 = vset.pattern.permute.xlu0 0
        %464 = vperm.xlu0 %463, %v429
        %v465 = vpop.permute.xlu0 %464
        %468 = vset.pattern.permute.xlu0 0
        %469 = vperm.xlu0 %468, %v430
        %v470 = vpop.permute.xlu0 %469
        %473 = vset.pattern.permute.xlu0 0
        %474 = vperm.xlu0 %473, %v431
        %v475 = vpop.permute.xlu0 %474
        %478 = vset.pattern.permute.xlu0 0
        %479 = vperm.xlu0 %478, %v432
        %v480 = vpop.permute.xlu0 %479
        %483 = vset.pattern.permute.xlu0 0
        %484 = vperm.xlu0 %483, %v433
        %v485 = vpop.permute.xlu0 %484
        %488 = vset.pattern.permute.xlu0 0
        %489 = vperm.xlu0 %488, %v434
        %v490 = vpop.permute.xlu0 %489
        %493 = vset.pattern.permute.xlu0 0
        %494 = vperm.xlu0 %493, %v435
        %v495 = vpop.permute.xlu0 %494
        %498 = vset.pattern.permute.xlu0 0
        %499 = vperm.xlu0 %498, %v436
        %v500 = vpop.permute.xlu0 %499
        %503 = vset.pattern.permute.xlu0 0
        %504 = vperm.xlu0 %503, %v437
        %v505 = vpop.permute.xlu0 %504
        %508 = vset.pattern.permute.xlu0 0
        %509 = vperm.xlu0 %508, %v438
        %v510 = vpop.permute.xlu0 %509
        %513 = vset.pattern.permute.xlu0 0
        %514 = vperm.xlu0 %513, %v439
        %v515 = vpop.permute.xlu0 %514
        %518 = vset.pattern.permute.xlu0 0
        %519 = vperm.xlu0 %518, %v440
        %v520 = vpop.permute.xlu0 %519
        %523 = vset.pattern.permute.xlu0 0
        %524 = vperm.xlu0 %523, %v441
        %v525 = vpop.permute.xlu0 %524
        %528 = vset.pattern.permute.xlu0 0
        %529 = vperm.xlu0 %528, %v442
        %v530 = vpop.permute.xlu0 %529
        %533 = vset.pattern.permute.xlu0 0
        %534 = vperm.xlu0 %533, %v443
        %v535 = vpop.permute.xlu0 %534
        %538 = vset.pattern.permute.xlu0 0
        %539 = vperm.xlu0 %538, %v444
        %v540 = vpop.permute.xlu0 %539
        %543 = vset.pattern.permute.xlu0 0
        %544 = vperm.xlu0 %543, %v445
        %v545 = vpop.permute.xlu0 %544
        %v548 = vlaneseq
        %v549 = vshrl.u32 %v548, 7
        %v550 = vsub.s32 0, %v549
        %v551 = vrot.slane %v446, %v550
        %v553 = vmul.f32 %v450, %v551
        %v554 = vmul.f32 %v455, %v551
        %v555 = vmul.f32 %v460, %v551
        %v556 = vmul.f32 %v465, %v551
        %v557 = vmul.f32 %v470, %v551
        %v558 = vmul.f32 %v475, %v551
        %v559 = vmul.f32 %v480, %v551
        %v560 = vmul.f32 %v485, %v551
        %v561 = vmul.f32 %v490, %v551
        %v562 = vmul.f32 %v495, %v551
        %v563 = vmul.f32 %v500, %v551
        %v564 = vmul.f32 %v505, %v551
        %v565 = vmul.f32 %v510, %v551
        %v566 = vmul.f32 %v515, %v551
        %v567 = vmul.f32 %v520, %v551
        %v568 = vmul.f32 %v525, %v551
        %v569 = vmul.f32 %v530, %v551
        %v570 = vmul.f32 %v535, %v551
        %v571 = vmul.f32 %v540, %v551
        %v572 = vmul.f32 %v545, %v551
        %v573 = vld [vmem:[%s2] sm:$0x1]
        %v575 = vlaneseq
        %v576 = vshrl.u32 %v575, 7
        %v577 = vsub.s32 0, %v576
        %v578 = vrot.slane %v573, %v577
        %v580 = vadd.f32 %v553, %v578
        %v581 = vadd.f32 %v554, %v578
        %v582 = vadd.f32 %v555, %v578
        %v583 = vadd.f32 %v556, %v578
        %v584 = vadd.f32 %v557, %v578
        %v585 = vadd.f32 %v558, %v578
        %v586 = vadd.f32 %v559, %v578
        %v587 = vadd.f32 %v560, %v578
        %v588 = vadd.f32 %v561, %v578
        %v589 = vadd.f32 %v562, %v578
        %v590 = vadd.f32 %v563, %v578
        %v591 = vadd.f32 %v564, %v578
        %v592 = vadd.f32 %v565, %v578
        %v593 = vadd.f32 %v566, %v578
        %v594 = vadd.f32 %v567, %v578
        %v595 = vadd.f32 %v568, %v578
        %v596 = vadd.f32 %v569, %v578
        %v597 = vadd.f32 %v570, %v578
        %v598 = vadd.f32 %v571, %v578
        %v599 = vadd.f32 %v572, %v578
        %v600 = vmul.f32 %v580, 0.5
        %v601 = vmul.f32 %v581, 0.5
        %v602 = vmul.f32 %v582, 0.5
        %v603 = vmul.f32 %v583, 0.5
        %v604 = vmul.f32 %v584, 0.5
        %v605 = vmul.f32 %v585, 0.5
        %v606 = vmul.f32 %v586, 0.5
        %v607 = vmul.f32 %v587, 0.5
        %v608 = vmul.f32 %v588, 0.5
        %v609 = vmul.f32 %v589, 0.5
        %v610 = vmul.f32 %v590, 0.5
        %v611 = vmul.f32 %v591, 0.5
        %v612 = vmul.f32 %v592, 0.5
        %v613 = vmul.f32 %v593, 0.5
        %v614 = vmul.f32 %v594, 0.5
        %v615 = vmul.f32 %v595, 0.5
        %v616 = vmul.f32 %v596, 0.5
        %v617 = vmul.f32 %v597, 0.5
        %v618 = vmul.f32 %v598, 0.5
        %v619 = vmul.f32 %v599, 0.5
        %v620 = vmul.f32 %v580, 0.70710677
        %v621 = vmul.f32 %v581, 0.70710677
        %v622 = vmul.f32 %v582, 0.70710677
        %v623 = vmul.f32 %v583, 0.70710677
        %v624 = vmul.f32 %v584, 0.70710677
        %v625 = vmul.f32 %v585, 0.70710677
        %v626 = vmul.f32 %v586, 0.70710677
        %v627 = vmul.f32 %v587, 0.70710677
        %v628 = vmul.f32 %v588, 0.70710677
        %v629 = vmul.f32 %v589, 0.70710677
        %v630 = vmul.f32 %v590, 0.70710677
        %v631 = vmul.f32 %v591, 0.70710677
        %v632 = vmul.f32 %v592, 0.70710677
        %v633 = vmul.f32 %v593, 0.70710677
        %v634 = vmul.f32 %v594, 0.70710677
        %v635 = vmul.f32 %v595, 0.70710677
        %v636 = vmul.f32 %v596, 0.70710677
        %v637 = vmul.f32 %v597, 0.70710677
        %v638 = vmul.f32 %v598, 0.70710677
        %v639 = vmul.f32 %v599, 0.70710677
        %v640 = verf.f32.pop %v620
        %v641 = verf.f32.pop %v621
        %v642 = verf.f32.pop %v622
        %v643 = verf.f32.pop %v623
        %v644 = verf.f32.pop %v624
        %v645 = verf.f32.pop %v625
        %v646 = verf.f32.pop %v626
        %v647 = verf.f32.pop %v627
        %v648 = verf.f32.pop %v628
        %v649 = verf.f32.pop %v629
        %v650 = verf.f32.pop %v630
        %v651 = verf.f32.pop %v631
        %v652 = verf.f32.pop %v632
        %v653 = verf.f32.pop %v633
        %v654 = verf.f32.pop %v634
        %v655 = verf.f32.pop %v635
        %v656 = verf.f32.pop %v636
        %v657 = verf.f32.pop %v637
        %v658 = verf.f32.pop %v638
        %v659 = verf.f32.pop %v639
        %v660 = vadd.f32 %v640, 1.0
        %v661 = vadd.f32 %v641, 1.0
        %v662 = vadd.f32 %v642, 1.0
        %v663 = vadd.f32 %v643, 1.0
        %v664 = vadd.f32 %v644, 1.0
        %v665 = vadd.f32 %v645, 1.0
        %v666 = vadd.f32 %v646, 1.0
        %v667 = vadd.f32 %v647, 1.0
        %v668 = vadd.f32 %v648, 1.0
        %v669 = vadd.f32 %v649, 1.0
        %v670 = vadd.f32 %v650, 1.0
        %v671 = vadd.f32 %v651, 1.0
        %v672 = vadd.f32 %v652, 1.0
        %v673 = vadd.f32 %v653, 1.0
        %v674 = vadd.f32 %v654, 1.0
        %v675 = vadd.f32 %v655, 1.0
        %v676 = vadd.f32 %v656, 1.0
        %v677 = vadd.f32 %v657, 1.0
        %v678 = vadd.f32 %v658, 1.0
        %v679 = vadd.f32 %v659, 1.0
        %v680 = vmul.f32 %v600, %v660
        %v681 = vmul.f32 %v601, %v661
        %v682 = vmul.f32 %v602, %v662
        %v683 = vmul.f32 %v603, %v663
        %v684 = vmul.f32 %v604, %v664
        %v685 = vmul.f32 %v605, %v665
        %v686 = vmul.f32 %v606, %v666
        %v687 = vmul.f32 %v607, %v667
        %v688 = vmul.f32 %v608, %v668
        %v689 = vmul.f32 %v609, %v669
        %v690 = vmul.f32 %v610, %v670
        %v691 = vmul.f32 %v611, %v671
        %v692 = vmul.f32 %v612, %v672
        %v693 = vmul.f32 %v613, %v673
        %v694 = vmul.f32 %v614, %v674
        %v695 = vmul.f32 %v615, %v675
        %v696 = vmul.f32 %v616, %v676
        %v697 = vmul.f32 %v617, %v677
        %v698 = vmul.f32 %v618, %v678
        %v699 = vmul.f32 %v619, %v679
        %v700 = vld [vmem:[%s3] sm:$0xff]
        %v701 = vld [vmem:[%s3 + $0x8] sm:$0xff]
        %v702 = vld [vmem:[%s3 + $0x10] sm:$0xff]
        %v703 = vld [vmem:[%s3 + $0x18] sm:$0xff]
        %v704 = vld [vmem:[%s3 + $0x20] sm:$0xff]
        %v705 = vld [vmem:[%s3 + $0x28] sm:$0xff]
        %v706 = vld [vmem:[%s3 + $0x30] sm:$0xff]
        %v707 = vld [vmem:[%s3 + $0x38] sm:$0xff]
        %v708 = vld [vmem:[%s3 + $0x40] sm:$0xff]
        %v709 = vld [vmem:[%s3 + $0x48] sm:$0xff]
        %v710 = vld [vmem:[%s3 + $0x50] sm:$0xff]
        %v711 = vld [vmem:[%s3 + $0x58] sm:$0xff]
        %v712 = vld [vmem:[%s3 + $0x60] sm:$0xff]
        %v713 = vld [vmem:[%s3 + $0x68] sm:$0xff]
        %v714 = vld [vmem:[%s3 + $0x70] sm:$0xff]
        %v715 = vld [vmem:[%s3 + $0x78] sm:$0xff]
        %v716 = vld [vmem:[%s4] sm:$0x1]
        %v718 = vlaneseq
        %v719 = vshrl.u32 %v718, 7
        %v720 = vsub.s32 0, %v719
        %v721 = vrot.slane %v716, %v720
        %723 = vmatprep.subr.mxu0 0.0
        %724 = vmatpush1.msra.mxu0 %v715
        %725 = vmatprep.subr.mxu0 0.0
        %726 = vmatpush1.msra.mxu0 %v714
        %727 = vmatprep.subr.mxu0 0.0
        %728 = vmatpush1.msra.mxu0 %v713
        %729 = vmatprep.subr.mxu0 0.0
        %730 = vmatpush1.msra.mxu0 %v712
        %731 = vmatprep.subr.mxu0 0.0
        %732 = vmatpush1.msra.mxu0 %v711
        %733 = vmatprep.subr.mxu0 0.0
        %734 = vmatpush1.msra.mxu0 %v710
        %735 = vmatprep.subr.mxu0 0.0
        %736 = vmatpush1.msra.mxu0 %v709
        %737 = vmatprep.subr.mxu0 0.0
        %738 = vmatpush1.msra.mxu0 %v708
        %739 = vmatprep.subr.mxu0 0.0
        %740 = vmatpush1.msra.mxu0 %v707
        %741 = vmatprep.subr.mxu0 0.0
        %742 = vmatpush1.msra.mxu0 %v706
        %743 = vmatprep.subr.mxu0 0.0
        %744 = vmatpush1.msra.mxu0 %v705
        %745 = vmatprep.subr.mxu0 0.0
        %746 = vmatpush1.msra.mxu0 %v704
        %747 = vmatprep.subr.mxu0 0.0
        %748 = vmatpush1.msra.mxu0 %v703
        %749 = vmatprep.subr.mxu0 0.0
        %750 = vmatpush1.msra.mxu0 %v702
        %751 = vmatprep.subr.mxu0 0.0
        %752 = vmatpush1.msra.mxu0 %v701
        %753 = vmatprep.subr.mxu0 0.0
        %754 = vmatpush1.msra.mxu0 %v700
        %755 = vmatprep.subr.mxu0 0.0
        %756 = vmatpush2.msra.mxu0 0.0
        %757 = vmatprep.subr.mxu0 0.0
        %758 = vmatpush2.msra.mxu0 0.0
        %759 = vmatprep.subr.mxu0 0.0
        %760 = vmatpush2.msra.mxu0 0.0
        %761 = vmatprep.subr.mxu0 0.0
        %762 = vmatpush2.msra.mxu0 0.0
        %763 = vmatprep.subr.mxu0 0.0
        %764 = vmatpush2.msra.mxu0 0.0
        %765 = vmatprep.subr.mxu0 0.0
        %766 = vmatpush2.msra.mxu0 0.0
        %767 = vmatprep.subr.mxu0 0.0
        %768 = vmatpush2.msra.mxu0 0.0
        %769 = vmatprep.subr.mxu0 0.0
        %770 = vmatpush2.msra.mxu0 0.0
        %771 = vmatprep.subr.mxu0 0.0
        %772 = vmatpush2.msra.mxu0 0.0
        %773 = vmatprep.subr.mxu0 0.0
        %774 = vmatpush2.msra.mxu0 0.0
        %775 = vmatprep.subr.mxu0 0.0
        %776 = vmatpush2.msra.mxu0 0.0
        %777 = vmatprep.subr.mxu0 0.0
        %778 = vmatpush2.msra.mxu0 0.0
        %779 = vmatprep.subr.mxu0 0.0
        %780 = vmatpush2.msra.mxu0 0.0
        %781 = vmatprep.subr.mxu0 0.0
        %782 = vmatpush2.msra.mxu0 0.0
        %783 = vmatprep.subr.mxu0 0.0
        %784 = vmatpush2.msra.mxu0 0.0
        %785 = vmatprep.subr.mxu0 0.0
        %786 = vmatpush2.msra.mxu0 0.0
        %787 = vmatprep.mubr.f32.mxu0 0.0
        %788 = vmatmul.mubr.f32.gmra.mxu0 %v680
        %v789 = vpop.f32.mrf.mxu0
        %v790 = vadd.f32 %v721, %v789
        %v791 = vpop.f32.mrf.mxu0
        %792 = vmatprep.mubr.f32.mxu0 0.0
        %793 = vmatmul.mubr.f32.gmra.mxu0 %v681
        %v794 = vpop.f32.mrf.mxu0
        %v795 = vadd.f32 %v721, %v794
        %v796 = vpop.f32.mrf.mxu0
        %797 = vmatprep.mubr.f32.mxu0 0.0
        %798 = vmatmul.mubr.f32.gmra.mxu0 %v682
        %v799 = vpop.f32.mrf.mxu0
        %v800 = vadd.f32 %v721, %v799
        %v801 = vpop.f32.mrf.mxu0
        %802 = vmatprep.mubr.f32.mxu0 0.0
        %803 = vmatmul.mubr.f32.gmra.mxu0 %v683
        %v804 = vpop.f32.mrf.mxu0
        %v805 = vadd.f32 %v721, %v804
        %v806 = vpop.f32.mrf.mxu0
        %807 = vmatprep.mubr.f32.mxu0 0.0
        %808 = vmatmul.mubr.f32.gmra.mxu0 %v684
        %v809 = vpop.f32.mrf.mxu0
        %v810 = vadd.f32 %v721, %v809
        %v811 = vpop.f32.mrf.mxu0
        %812 = vmatprep.mubr.f32.mxu0 0.0
        %813 = vmatmul.mubr.f32.gmra.mxu0 %v685
        %v814 = vpop.f32.mrf.mxu0
        %v815 = vadd.f32 %v721, %v814
        %v816 = vpop.f32.mrf.mxu0
        %817 = vmatprep.mubr.f32.mxu0 0.0
        %818 = vmatmul.mubr.f32.gmra.mxu0 %v686
        %v819 = vpop.f32.mrf.mxu0
        %v820 = vadd.f32 %v721, %v819
        %v821 = vpop.f32.mrf.mxu0
        %822 = vmatprep.mubr.f32.mxu0 0.0
        %823 = vmatmul.mubr.f32.gmra.mxu0 %v687
        %v824 = vpop.f32.mrf.mxu0
        %v825 = vadd.f32 %v721, %v824
        %v826 = vpop.f32.mrf.mxu0
        %827 = vmatprep.mubr.f32.mxu0 0.0
        %828 = vmatmul.mubr.f32.gmra.mxu0 %v688
        %v829 = vpop.f32.mrf.mxu0
        %v830 = vadd.f32 %v721, %v829
        %v831 = vpop.f32.mrf.mxu0
        %832 = vmatprep.mubr.f32.mxu0 0.0
        %833 = vmatmul.mubr.f32.gmra.mxu0 %v689
        %v834 = vpop.f32.mrf.mxu0
        %v835 = vadd.f32 %v721, %v834
        %v836 = vpop.f32.mrf.mxu0
        %837 = vmatprep.mubr.f32.mxu0 0.0
        %838 = vmatmul.mubr.f32.gmra.mxu0 %v690
        %v839 = vpop.f32.mrf.mxu0
        %v840 = vadd.f32 %v721, %v839
        %v841 = vpop.f32.mrf.mxu0
        %842 = vmatprep.mubr.f32.mxu0 0.0
        %843 = vmatmul.mubr.f32.gmra.mxu0 %v691
        %v844 = vpop.f32.mrf.mxu0
        %v845 = vadd.f32 %v721, %v844
        %v846 = vpop.f32.mrf.mxu0
        %847 = vmatprep.mubr.f32.mxu0 0.0
        %848 = vmatmul.mubr.f32.gmra.mxu0 %v692
        %v849 = vpop.f32.mrf.mxu0
        %v850 = vadd.f32 %v721, %v849
        %v851 = vpop.f32.mrf.mxu0
        %852 = vmatprep.mubr.f32.mxu0 0.0
        %853 = vmatmul.mubr.f32.gmra.mxu0 %v693
        %v854 = vpop.f32.mrf.mxu0
        %v855 = vadd.f32 %v721, %v854
        %v856 = vpop.f32.mrf.mxu0
        %857 = vmatprep.mubr.f32.mxu0 0.0
        %858 = vmatmul.mubr.f32.gmra.mxu0 %v694
        %v859 = vpop.f32.mrf.mxu0
        %v860 = vadd.f32 %v721, %v859
        %v861 = vpop.f32.mrf.mxu0
        %862 = vmatprep.mubr.f32.mxu0 0.0
        %863 = vmatmul.mubr.f32.gmra.mxu0 %v695
        %v864 = vpop.f32.mrf.mxu0
        %v865 = vadd.f32 %v721, %v864
        %v866 = vpop.f32.mrf.mxu0
        %867 = vmatprep.mubr.f32.mxu0 0.0
        %868 = vmatmul.mubr.f32.gmra.mxu0 %v696
        %v869 = vpop.f32.mrf.mxu0
        %v870 = vadd.f32 %v721, %v869
        %v871 = vpop.f32.mrf.mxu0
        %872 = vmatprep.mubr.f32.mxu0 0.0
        %873 = vmatmul.mubr.f32.gmra.mxu0 %v697
        %v874 = vpop.f32.mrf.mxu0
        %v875 = vadd.f32 %v721, %v874
        %v876 = vpop.f32.mrf.mxu0
        %877 = vmatprep.mubr.f32.mxu0 0.0
        %878 = vmatmul.mubr.f32.gmra.mxu0 %v698
        %v879 = vpop.f32.mrf.mxu0
        %v880 = vadd.f32 %v721, %v879
        %v881 = vpop.f32.mrf.mxu0
        %882 = vmatprep.mubr.f32.mxu0 0.0
        %883 = vmatmul.mubr.f32.gmra.mxu0 %v699
        %v884 = vpop.f32.mrf.mxu0
        %v885 = vadd.f32 %v721, %v884
        %v886 = vpop.f32.mrf.mxu0
        %887 = vdwg.mxu0
        %888 = vst [vmem:[%s218] sm:$0xff] %v790
        %889 = vst [vmem:[%s218 + $0x8] sm:$0xff] %v795
        %890 = vst [vmem:[%s218 + $0x10] sm:$0xff] %v800
        %891 = vst [vmem:[%s218 + $0x18] sm:$0xff] %v805
        %892 = vst [vmem:[%s218 + $0x20] sm:$0xff] %v810
        %893 = vst [vmem:[%s218 + $0x28] sm:$0xff] %v815
        %894 = vst [vmem:[%s218 + $0x30] sm:$0xff] %v820
        %895 = vst [vmem:[%s218 + $0x38] sm:$0xff] %v825
        %896 = vst [vmem:[%s218 + $0x40] sm:$0xff] %v830
        %897 = vst [vmem:[%s218 + $0x48] sm:$0xff] %v835
        %898 = vst [vmem:[%s218 + $0x50] sm:$0xff] %v840
        %899 = vst [vmem:[%s218 + $0x58] sm:$0xff] %v845
        %900 = vst [vmem:[%s218 + $0x60] sm:$0xff] %v850
        %901 = vst [vmem:[%s218 + $0x68] sm:$0xff] %v855
        %902 = vst [vmem:[%s218 + $0x70] sm:$0xff] %v860
        %903 = vst [vmem:[%s218 + $0x78] sm:$0xff] %v865
        %904 = vst [vmem:[%s218 + $0x80] sm:$0xff] %v870
        %905 = vst [vmem:[%s218 + $0x88] sm:$0xff] %v875
        %906 = vst [vmem:[%s218 + $0x90] sm:$0xff] %v880
        %907 = vst [vmem:[%s218 + $0x98] sm:$0xff] %v885
        %s908 = sand.u32 %s137, 1
        %s909 = scalar_lea.sflag [#allocation3], %s908
        %s910 = sand.u32 %s137, 1
        %s911 = smul.addr %s910, 160
        %s912 = scalar_lea.vmem [#allocation2], %s911
        // Predicated region
        $region41: #{tpu_custom_call.1} parent=39 // pred_check
          %p913 = pneg %p147
        $region42: #{tpu_custom_call.1} parent=39 // pred_check_branch
          %915 = sbr.rel (%p913) target = $region44
        $region43: #{tpu_custom_call.1} parent=39 // pred_region
          %s916 = smul.u32 20, %s19
          %s918 = ssub.s32 2560, 2560
          %919 = vsyncadd %s909, %s918
          %s920 = smul.addr %s916, 128
          %s921 = scalar_lea.hbm %s5, %s920
          %s922 = sshll.u32 %s912, 4
          %s923 = int_to_ptr.vmem [resolvable:$true] %s922
          %928 = dma.vmem_to_hbm [thread:$0]  %s923, 2560, %s921, %s909, 128, 128, 8
        $region44: #{tpu_custom_call.1} parent=39 // pred_fallthru
          _
      $region40: #{tpu_custom_call.1} parent=5 // pred_fallthru
        _
      %p929 = scmp.le.s32.totalorder 2, %s14
      // Predicated region
      $region45: #{tpu_custom_call.1} parent=5 // pred_check
        %p930 = pneg %p929
      $region46: #{tpu_custom_call.1} parent=5 // pred_check_branch
        %932 = sbr.rel (%p930) target = $region48
      $region47: #{tpu_custom_call.1} parent=5 // pred_region
        %s933 = ssub.s32 %s14, 2
        // Predicated region
        $region49: #{tpu_custom_call.1} parent=47 // pred_check
          %p934 = pneg %p153
        $region50: #{tpu_custom_call.1} parent=47 // pred_check_branch
          %936 = sbr.rel (%p934) target = $region52
        $region51: #{tpu_custom_call.1} parent=47 // pred_region
          %s937 = sand.u32 %s138, 1
          %s938 = scalar_lea.sflag [#allocation3], %s937
          %s939 = sand.u32 %s138, 1
          %s940 = smul.addr %s939, 160
          %s941 = scalar_lea.vmem [#allocation2], %s940
          %942 = dma.done %s938, 2560
        $region52: #{tpu_custom_call.1} parent=47 // pred_fallthru
          _
      $region48: #{tpu_custom_call.1} parent=5 // pred_fallthru
        _
    $region6: #{tpu_custom_call.1} parent=1 // loop_footer
      %s18 = sadd.s32 1, %s14
    $region7: #{tpu_custom_call.1} parent=1 // loop_footer_branch
      %13 = sbr.rel target = $region3
    $region8: #{tpu_custom_call.1} parent=1 // loop_exit
      _
    %943 = vsyncpa [#allocation3], 1
    %s944 = scalar_lea.sflag [#allocation3], 1
    %945 = vsyncpa %s944, 1

</llo_original>
